<compile_context>
chip_gen: v7x
topology: tpu7x:2x2x1
jax: 0.10.0
libtpu: 0.0.40
codegen_flags: <defaults>
</compile_context>

<pallas_src>
import functools

import jax
import jax.numpy as jnp
from jax.experimental import pallas as pl
from jax.experimental.pallas import tpu as pltpu  # noqa: F401

LANE = 128
NEG_PAD = -1e30  # f32 sentinel for padded class columns (never cast to low precision)


def _round_up(x, m):
    return ((x + m - 1) // m) * m


# ----------------------------- Pallas kernel ------------------------------- #

def _gcn_fused_kernel(a_ref, x_ref, w1_ref, w2_ref, b_ref, emb_ref, out_ref,
                      *, hp, op):
    """Fused 2-layer GCN forward; all operands resident in VMEM.

    a_ref  : (N, N)    bf16   normalized adjacency
    x_ref  : (N, Fin)  bf16   node features (unpadded Fin)
    w1_ref : (Fin, hp) bf16   layer-1 weight, hidden padded to 128 lanes
    w2_ref : (hp, op)  bf16   layer-2 weight, classes padded to 128 lanes
    b_ref  : (2, max)  f32    row 0 = b1 (zero-padded), row 1 = b2 (-1e30 pad)
    """
    a = a_ref[...]

    # ---- layer 1:  emb = A_hat @ (X @ W1) + b1  (contract Fin=16 first) ----
    xw1 = jnp.dot(x_ref[...], w1_ref[...], preferred_element_type=jnp.float32)
    emb = jnp.dot(a, xw1.astype(jnp.bfloat16),
                  preferred_element_type=jnp.float32) + b_ref[0:1, :hp]
    emb_ref[...] = emb  # lane-dense (128-wide) f32 store

    # ---- layer 2:  z = A_hat @ (relu(emb) @ W2) + b2 ------------------------
    # TODO(synk): F.dropout is identity here (module in eval mode); training-mode
    # dropout is not implemented.
    h = jnp.maximum(emb, 0.0).astype(jnp.bfloat16)
    hw = jnp.dot(h, w2_ref[...], preferred_element_type=jnp.float32)
    z = jnp.dot(a, hw.astype(jnp.bfloat16),
                preferred_element_type=jnp.float32) + b_ref[1:2, :op]

    # Padded class columns carry z = 0 + b2_pad = -1e30 (W2 pad cols are zero),
    # so they drop out of the row max and exp-sum with no explicit mask.
    m = jnp.max(z, axis=1, keepdims=True)
    lse = m + jnp.log(jnp.sum(jnp.exp(z - m), axis=1, keepdims=True))
    out_ref[...] = z - lse  # lane-dense store; pad columns sliced off outside


def _full_spec(shape):
    # Whole-array block, single grid point (everything fits VMEM at this size).
    return pl.BlockSpec(shape, lambda: (0,) * len(shape))


def _fused_call(a_hat, x, w1p, w2p, bp):
    n = a_hat.shape[0]
    f_in = x.shape[1]
    hp = w1p.shape[1]
    op = w2p.shape[1]

    flops = (2 * n * f_in * hp + 2 * n * n * hp
             + 2 * n * hp * op + 2 * n * n * op)
    bytes_accessed = (2 * (n * n + n * f_in + f_in * hp + hp * op)   # bf16 ins
                      + 4 * bp.size                                  # f32 biases
                      + 4 * (n * hp + n * op))                       # f32 outs
    transcendentals = n * op + n  # exp + log of the log_softmax

    kernel = functools.partial(_gcn_fused_kernel, hp=hp, op=op)
    return pl.pallas_call(
        kernel,
        out_shape=(
            jax.ShapeDtypeStruct((n, hp), jnp.float32),   # padded embedding
            jax.ShapeDtypeStruct((n, op), jnp.float32),   # padded log-probs
        ),
        in_specs=[
            _full_spec(a_hat.shape),
            _full_spec(x.shape),
            _full_spec(w1p.shape),
            _full_spec(w2p.shape),
            _full_spec(bp.shape),
        ],
        out_specs=(
            _full_spec((n, hp)),
            _full_spec((n, op)),
        ),
        cost_estimate=pl.CostEstimate(
            flops=flops,
            transcendentals=transcendentals,
            bytes_accessed=bytes_accessed,
        ),
    )(a_hat, x, w1p, w2p, bp)


# ------------------------------- JAX glue ---------------------------------- #

def normalized_adjacency(edge_index, num_nodes):
    """Dense GCN-normalized adjacency D^-1/2 (A + I_remaining) D^-1/2.

    Matches PyG gcn_norm / add_remaining_self_loops: every edge (including
    explicit and duplicate self-loops) keeps weight 1, and a weight-1
    self-loop is added only to nodes that have none.  Computed ONCE per
    (static) graph, outside the per-forward jit.
    """
    src = edge_index[0]
    dst = edge_index[1]
    a = jnp.zeros((num_nodes, num_nodes), jnp.float32)
    a = a.at[dst, src].add(1.0)                   # message j (src) -> i (dst)
    diag = jnp.arange(num_nodes)
    has_self = a[diag, diag] > 0
    a = a.at[diag, diag].add(jnp.where(has_self, 0.0, 1.0))  # remaining loops
    deg = jnp.sum(a, axis=1)                      # target-side degree
    dinv = jnp.where(deg > 0, jax.lax.rsqrt(deg), 0.0)
    return a * dinv[:, None] * dinv[None, :]


def glorot_uniform(key, fan_in, fan_out):
    limit = jnp.sqrt(6.0 / (fan_in + fan_out))
    return jax.random.uniform(
        key, (fan_in, fan_out), jnp.float32, minval=-limit, maxval=limit
    )


def pack_gcn_params(w1, b1, w2, b2):
    """One-time padding / packing / bf16 cast of the static parameters."""
    f_in, hidden_dim = w1.shape
    _, output_dim = w2.shape
    hp = _round_up(hidden_dim, LANE)
    op = _round_up(output_dim, LANE)
    cp = max(hp, op)

    w1p = jnp.pad(w1, ((0, 0), (0, hp - hidden_dim))).astype(jnp.bfloat16)
    w2p = jnp.pad(w2, ((0, hp - hidden_dim), (0, op - output_dim))).astype(jnp.bfloat16)
    # Biases merged into one (2, cp) f32 operand; b2's padding is -1e30 so the
    # padded class columns vanish from the in-kernel log_softmax automatically.
    bp = jnp.stack([
        jnp.pad(b1.astype(jnp.float32), (0, cp - hidden_dim)),
        jnp.pad(b2.astype(jnp.float32), (0, cp - output_dim),
                constant_values=NEG_PAD),
    ])
    return w1p, w2p, bp


@functools.partial(jax.jit, static_argnums=(5, 6))
def gcn_forward(x, a_hat_bf16, w1p, w2p, bp, hidden_dim, output_dim):
    xb = x.astype(jnp.bfloat16)        # only per-call prep left in the forward
    emb_p, out_p = _fused_call(a_hat_bf16, xb, w1p, w2p, bp)
    # Module contract returns (N, hidden) and (N, classes); slice off padding.
    return emb_p[:, :hidden_dim], out_p[:, :output_dim]


def gcn_reference_f32(x, a_hat, w1, b1, w2, b2):
    """Full-precision pure-JAX reference of the same forward pass."""
    with jax.default_matmul_precision("highest"):
        emb = a_hat @ (x @ w1) + b1
        h = jnp.maximum(emb, 0.0)
        z = a_hat @ (h @ w2) + b2
    return emb, jax.nn.log_softmax(z, axis=1)


def gcn_reference_mixed(x, a_hat, w1, b1, w2, b2):
    """Pure-JAX reference mirroring the kernel's bf16-operand / f32-accum math."""
    bf, f32 = jnp.bfloat16, jnp.float32
    ab = a_hat.astype(bf)
    xw1 = jnp.dot(x.astype(bf), w1.astype(bf), preferred_element_type=f32)
    emb = jnp.dot(ab, xw1.astype(bf), preferred_element_type=f32) + b1
    h = jnp.maximum(emb, 0.0).astype(bf)
    hw = jnp.dot(h, w2.astype(bf), preferred_element_type=f32)
    z = jnp.dot(ab, hw.astype(bf), preferred_element_type=f32) + b2
    return emb, jax.nn.log_softmax(z, axis=1)


# --------------------------------- main ------------------------------------ #

if __name__ == "__main__":
    num_nodes = 64
    num_edges = 256
    input_dim = 16
    hidden_dim = 32
    output_dim = 8

    key = jax.random.PRNGKey(0)
    k_x, k_e, k_w1, k_w2 = jax.random.split(key, 4)

    # node features
    x = jax.random.normal(k_x, (num_nodes, input_dim), jnp.float32)
    # random edge_index (2, E), PyG convention: row 0 = source, row 1 = target
    edge_index = jax.random.randint(k_e, (2, num_edges), 0, num_nodes, jnp.int32)

    # static graph -> adjacency precomputed & cast to bf16 once, outside the jit
    a_hat = jax.block_until_ready(normalized_adjacency(edge_index, num_nodes))
    a_hat_bf16 = a_hat.astype(jnp.bfloat16)

    # deterministic parameter init (GCNConv: glorot weight, zero bias)
    w1 = glorot_uniform(k_w1, input_dim, hidden_dim)
    b1 = jnp.zeros((hidden_dim,), jnp.float32)
    w2 = glorot_uniform(k_w2, hidden_dim, output_dim)
    b2 = jnp.zeros((output_dim,), jnp.float32)

    # one-time packing/padding of the parameters (hoisted out of the forward)
    w1p, w2p, bp = pack_gcn_params(w1, b1, w2, b2)

    embedding, output = gcn_forward(x, a_hat_bf16, w1p, w2p, bp,
                                    hidden_dim, output_dim)
    jax.block_until_ready((embedding, output))

    assert embedding.shape == (num_nodes, hidden_dim)
    assert output.shape == (num_nodes, output_dim)
    # log_softmax rows must (approximately) exponentiate-sum to 1
    assert jnp.allclose(jnp.exp(output).sum(axis=1), 1.0, atol=1e-3)

    # tight check vs a reference with the SAME bf16-operand numerics
    emb_mx, out_mx = gcn_reference_mixed(x, a_hat, w1, b1, w2, b2)
    assert jnp.allclose(embedding, emb_mx, atol=5e-3, rtol=5e-3)
    assert jnp.allclose(output, out_mx, atol=5e-3, rtol=5e-3)

    # looser check vs the full-precision f32 reference (semantics fidelity)
    emb_f32, out_f32 = gcn_reference_f32(x, a_hat, w1, b1, w2, b2)
    assert jnp.allclose(embedding, emb_f32, atol=5e-2, rtol=5e-2)
    assert jnp.allclose(output, out_f32, atol=5e-2, rtol=5e-2)

    print("KERNEL_OK")
</pallas_src>

<mosaic_0001>
module attributes {stable_mosaic.version = 11 : i64} {
  func.func @_gcn_fused_kernel(%arg0: memref<64x64xbf16, #tpu.memory_space<vmem>>, %arg1: memref<64x16xbf16, #tpu.memory_space<vmem>>, %arg2: memref<16x128xbf16, #tpu.memory_space<vmem>>, %arg3: memref<128x128xbf16, #tpu.memory_space<vmem>>, %arg4: memref<2x128xf32, #tpu.memory_space<vmem>>, %arg5: memref<64x128xf32, #tpu.memory_space<vmem>>, %arg6: memref<64x128xf32, #tpu.memory_space<vmem>>) attributes {dimension_semantics = [], scalar_prefetch = 0 : i64, scratch_operands = 0 : i64, tpu.core_type = #tpu.core_type<tc>} {
    %c0 = arith.constant 0 : index
    %c0_0 = arith.constant 0 : index
    %0 = vector.load %arg0[%c0, %c0_0] : memref<64x64xbf16, #tpu.memory_space<vmem>>, vector<64x64xbf16>
    %c0_1 = arith.constant 0 : index
    %c0_2 = arith.constant 0 : index
    %1 = vector.load %arg1[%c0_1, %c0_2] : memref<64x16xbf16, #tpu.memory_space<vmem>>, vector<64x16xbf16>
    %c0_3 = arith.constant 0 : index
    %c0_4 = arith.constant 0 : index
    %2 = vector.load %arg2[%c0_3, %c0_4] : memref<16x128xbf16, #tpu.memory_space<vmem>>, vector<16x128xbf16>
    %cst = arith.constant dense<0.000000e+00> : vector<64x128xf32>
    %3 = tpu.matmul %1, %2, %cst {dimension_numbers = #tpu.dot_dimension_numbers<[1], [0], [0], [1], [0, 0, 1, 1], [], []>} : vector<64x16xbf16>, vector<16x128xbf16>, vector<64x128xf32> -> vector<64x128xf32>
    %4 = arith.truncf %3 : vector<64x128xf32> to vector<64x128xbf16>
    %cst_5 = arith.constant dense<0.000000e+00> : vector<64x128xf32>
    %5 = tpu.matmul %0, %4, %cst_5 {dimension_numbers = #tpu.dot_dimension_numbers<[1], [0], [0], [1], [0, 0, 1, 1], [], []>} : vector<64x64xbf16>, vector<64x128xbf16>, vector<64x128xf32> -> vector<64x128xf32>
    %c0_6 = arith.constant 0 : index
    %c0_7 = arith.constant 0 : index
    %6 = vector.load %arg4[%c0_6, %c0_7] : memref<2x128xf32, #tpu.memory_space<vmem>>, vector<1x128xf32>
    %7 = vector.broadcast %6 : vector<1x128xf32> to vector<64x128xf32>
    %8 = arith.addf %5, %7 : vector<64x128xf32>
    %c0_8 = arith.constant 0 : index
    %c0_9 = arith.constant 0 : index
    %9 = vector.load %arg5[%c0_8, %c0_9] : memref<64x128xf32, #tpu.memory_space<vmem>>, vector<64x128xf32>
    tpu.vector_store %arg5[%c0_8, %c0_9], %8 {strides = array<i32>} : memref<64x128xf32, #tpu.memory_space<vmem>>, vector<64x128xf32>,
    %cst_10 = arith.constant 0.000000e+00 : f32
    %10 = vector.broadcast %cst_10 : f32 to vector<64x128xf32>
    %11 = arith.maximumf %8, %10 : vector<64x128xf32>
    %12 = arith.truncf %11 : vector<64x128xf32> to vector<64x128xbf16>
    %c0_11 = arith.constant 0 : index
    %c0_12 = arith.constant 0 : index
    %13 = vector.load %arg3[%c0_11, %c0_12] : memref<128x128xbf16, #tpu.memory_space<vmem>>, vector<128x128xbf16>
    %cst_13 = arith.constant dense<0.000000e+00> : vector<64x128xf32>
    %14 = tpu.matmul %12, %13, %cst_13 {dimension_numbers = #tpu.dot_dimension_numbers<[1], [0], [0], [1], [0, 0, 1, 1], [], []>} : vector<64x128xbf16>, vector<128x128xbf16>, vector<64x128xf32> -> vector<64x128xf32>
    %15 = arith.truncf %14 : vector<64x128xf32> to vector<64x128xbf16>
    %cst_14 = arith.constant dense<0.000000e+00> : vector<64x128xf32>
    %16 = tpu.matmul %0, %15, %cst_14 {dimension_numbers = #tpu.dot_dimension_numbers<[1], [0], [0], [1], [0, 0, 1, 1], [], []>} : vector<64x64xbf16>, vector<64x128xbf16>, vector<64x128xf32> -> vector<64x128xf32>
    %c1 = arith.constant 1 : index
    %c0_15 = arith.constant 0 : index
    %17 = vector.load %arg4[%c1, %c0_15] : memref<2x128xf32, #tpu.memory_space<vmem>>, vector<1x128xf32>
    %18 = vector.broadcast %17 : vector<1x128xf32> to vector<64x128xf32>
    %19 = arith.addf %16, %18 : vector<64x128xf32>
    %cst_16 = arith.constant dense<0xFF800000> : vector<64xf32>
    %20 = vector.multi_reduction <maximumf>, %19, %cst_16 [1] : vector<64x128xf32> to vector<64xf32>
    %21 = vector.shape_cast %20 : vector<64xf32> to vector<64x1xf32>
    %22 = vector.broadcast %21 : vector<64x1xf32> to vector<64x128xf32>
    %23 = arith.subf %19, %22 : vector<64x128xf32>
    %24 = math.exp %23 : vector<64x128xf32>
    %cst_17 = arith.constant dense<0.000000e+00> : vector<64xf32>
    %25 = vector.multi_reduction <add>, %24, %cst_17 [1] : vector<64x128xf32> to vector<64xf32>
    %26 = vector.shape_cast %25 : vector<64xf32> to vector<64x1xf32>
    %27 = math.log %26 : vector<64x1xf32>
    %28 = arith.addf %21, %27 : vector<64x1xf32>
    %29 = vector.broadcast %28 : vector<64x1xf32> to vector<64x128xf32>
    %30 = arith.subf %19, %29 : vector<64x128xf32>
    %c0_18 = arith.constant 0 : index
    %c0_19 = arith.constant 0 : index
    %31 = vector.load %arg6[%c0_18, %c0_19] : memref<64x128xf32, #tpu.memory_space<vmem>>, vector<64x128xf32>
    tpu.vector_store %arg6[%c0_18, %c0_19], %30 {strides = array<i32>} : memref<64x128xf32, #tpu.memory_space<vmem>>, vector<64x128xf32>,
    return
  }
}

</mosaic_0001>

<llo_original>
// kernel: gcn_forward.1
$region0: #{gcn_forward.1}
  #allocation0 [shape = 'u32[]', space=smem, size = 0x4, offset = 0x4, fixed_abs, tag = 'smem constant byte address 0x4 - core index']
  #allocation1 [shape = 'u32[144,128]{1,0:T(1,128)}', space=vmem, size = 0x12000, scoped, tag = 'internal scratch']
  %s0 = inlined_call_operand.hbm [shape: bf16[64,64], index: 0, kind: input, shape index: {}]
  %s1 = inlined_call_operand.vmem [shape: bf16[64,16], index: 1, kind: input, shape index: {}]
  %s2 = inlined_call_operand.vmem [shape: bf16[16,128], index: 2, kind: input, shape index: {}]
  %s3 = inlined_call_operand.vmem [shape: bf16[128,128], index: 3, kind: input, shape index: {}]
  %s4 = inlined_call_operand.vmem [shape: f32[2,128], index: 4, kind: input, shape index: {}]
  %s5 = inlined_call_operand.vmem [shape: f32[64,128], index: 5, kind: output, shape index: {0}]
  %s6 = inlined_call_operand.vmem [shape: f32[64,128], index: 6, kind: output, shape index: {1}]
  %7 = xla_tuple %s5, %s6
  %s8 = sld [smem:[#allocation0]]
  $region42: #{gcn_forward.1} parent=0
    _
  %s10 = ssub.s32 1, %s8
  %s11 = scalar_select 0, %s10, %s8
  $region1: #{gcn_forward.1} parent=0
    #allocation2 [shape = 'u8[16384]{0}', space=vmem, size = 0x4000, scoped, tag = 'input window, operand 0, single buffered']
    #allocation3 [shape = 's32[1]{0}', space=sflag, size = 0x4, scoped, tag = 'scoped memory for gcn_forward.1']
    %12 = vsyncpa [#allocation3], 0
    // Predicated region
    $region2: #{gcn_forward.1} parent=1 // pred_check
      _
    $region3: #{gcn_forward.1} parent=1 // pred_check_branch
      %14 = sbr.rel (0) target = $region5
    $region4: #{gcn_forward.1} parent=1 // pred_region
      %s16 = ssub.s32 512, 512
      %17 = vsyncadd [#allocation3], %s16
      %s18 = sshll.u32 [#allocation2], 4
      %s19 = int_to_ptr.vmem [resolvable:$true] %s18
      %24 = dma.hbm_to_vmem [thread:$0]  %s0, 512, %s19, [#allocation3], 64, 64, 4
    $region5: #{gcn_forward.1} parent=1 // pred_fallthru
      _
    // Predicated region
    $region6: #{gcn_forward.1} parent=1 // pred_check
      _
    $region7: #{gcn_forward.1} parent=1 // pred_check_branch
      %26 = sbr.rel (0) target = $region9
    $region8: #{gcn_forward.1} parent=1 // pred_region
      _
    $region9: #{gcn_forward.1} parent=1 // pred_fallthru
      _
    // Predicated region
    $region10: #{gcn_forward.1} parent=1 // pred_check
      _
    $region11: #{gcn_forward.1} parent=1 // pred_check_branch
      %28 = sbr.rel (0) target = $region13
    $region12: #{gcn_forward.1} parent=1 // pred_region
      _
    $region13: #{gcn_forward.1} parent=1 // pred_fallthru
      _
    // Predicated region
    $region14: #{gcn_forward.1} parent=1 // pred_check
      _
    $region15: #{gcn_forward.1} parent=1 // pred_check_branch
      %30 = sbr.rel (0) target = $region17
    $region16: #{gcn_forward.1} parent=1 // pred_region
      _
    $region17: #{gcn_forward.1} parent=1 // pred_fallthru
      _
    // Predicated region
    $region18: #{gcn_forward.1} parent=1 // pred_check
      _
    $region19: #{gcn_forward.1} parent=1 // pred_check_branch
      %32 = sbr.rel (0) target = $region21
    $region20: #{gcn_forward.1} parent=1 // pred_region
      _
    $region21: #{gcn_forward.1} parent=1 // pred_fallthru
      _
    // Predicated region
    $region22: #{gcn_forward.1} parent=1 // pred_check
      _
    $region23: #{gcn_forward.1} parent=1 // pred_check_branch
      %34 = sbr.rel (0) target = $region25
    $region24: #{gcn_forward.1} parent=1 // pred_region
      %35 = dma.done [#allocation3], 512
    $region25: #{gcn_forward.1} parent=1 // pred_fallthru
      _
    %v37 = vld [vmem:[#allocation2] sm:$0xf]
    %v38 = vld [vmem:[#allocation2 + $0x4] sm:$0xf]
    %v39 = vld [vmem:[#allocation2 + $0x8] sm:$0xf]
    %v40 = vld [vmem:[#allocation2 + $0xc] sm:$0xf]
    %v41 = vld [vmem:[#allocation2 + $0x10] sm:$0xf]
    %v42 = vld [vmem:[#allocation2 + $0x14] sm:$0xf]
    %v43 = vld [vmem:[#allocation2 + $0x18] sm:$0xf]
    %v44 = vld [vmem:[#allocation2 + $0x1c] sm:$0xf]
    %v45 = vld [vmem:[%s1] sm:$0xf]
    %v46 = vld [vmem:[%s1 + $0x4] sm:$0xf]
    %v47 = vld [vmem:[%s1 + $0x8] sm:$0xf]
    %v48 = vld [vmem:[%s1 + $0xc] sm:$0xf]
    %v49 = vld [vmem:[%s1 + $0x10] sm:$0xf]
    %v50 = vld [vmem:[%s1 + $0x14] sm:$0xf]
    %v51 = vld [vmem:[%s1 + $0x18] sm:$0xf]
    %v52 = vld [vmem:[%s1 + $0x1c] sm:$0xf]
    %v53 = vld [vmem:[%s2] sm:$0xf]
    %v54 = vld [vmem:[%s2 + $0x4] sm:$0xf]
    %v63 = vunpack.c.l.b16 %v45
    %v64 = vunpack.c.l.b16 %v46
    %v65 = vunpack.c.l.b16 %v47
    %v66 = vunpack.c.l.b16 %v48
    %v67 = vunpack.c.l.b16 %v49
    %v68 = vunpack.c.l.b16 %v50
    %v69 = vunpack.c.l.b16 %v51
    %v70 = vunpack.c.l.b16 %v52
    %v71 = vpack.c.b16 %v64, %v63
    %v72 = vpack.c.b16 %v66, %v65
    %v73 = vpack.c.b16 %v68, %v67
    %v74 = vpack.c.b16 %v70, %v69
    %v77 = vunpack.c.l.b16 %v53
    %v78 = vunpack.c.l.b16 %v54
    %v79 = vpack.c.b16 %v78, %v77
    %vm81 = vcmask 130048
    %v83 = vsel %vm81, %v71, 0
    %v86 = vsel %vm81, %v72, 0
    %v89 = vsel %vm81, %v73, 0
    %v92 = vsel %vm81, %v74, 0
    %94 = vmatprep.subr.bf16.mxu0 0
    %95 = vmatpush1.bf16.msra.mxu0 %v79
    %96 = vmatprep.subr.bf16.mxu0 0
    %97 = vmatpush1.bf16.msra.mxu0 0
    %98 = vmatprep.subr.bf16.mxu0 0
    %99 = vmatpush1.bf16.msra.mxu0 0
    %100 = vmatprep.subr.bf16.mxu0 0
    %101 = vmatpush1.bf16.msra.mxu0 0
    %102 = vmatprep.subr.bf16.mxu0 0
    %103 = vmatpush1.bf16.msra.mxu0 0
    %104 = vmatprep.subr.bf16.mxu0 0
    %105 = vmatpush1.bf16.msra.mxu0 0
    %106 = vmatprep.subr.bf16.mxu0 0
    %107 = vmatpush1.bf16.msra.mxu0 0
    %108 = vmatprep.subr.bf16.mxu0 0
    %109 = vmatpush1.bf16.msra.mxu0 0
    %110 = vmatprep.subr.bf16.mxu0 0
    %111 = vmatpush1.bf16.msra.mxu0 0
    %112 = vmatprep.subr.bf16.mxu0 0
    %113 = vmatpush1.bf16.msra.mxu0 0
    %114 = vmatprep.subr.bf16.mxu0 0
    %115 = vmatpush1.bf16.msra.mxu0 0
    %116 = vmatprep.subr.bf16.mxu0 0
    %117 = vmatpush1.bf16.msra.mxu0 0
    %118 = vmatprep.subr.bf16.mxu0 0
    %119 = vmatpush1.bf16.msra.mxu0 0
    %120 = vmatprep.subr.bf16.mxu0 0
    %121 = vmatpush1.bf16.msra.mxu0 0
    %122 = vmatprep.subr.bf16.mxu0 0
    %123 = vmatpush1.bf16.msra.mxu0 0
    %124 = vmatprep.subr.bf16.mxu0 0
    %125 = vmatpush1.bf16.msra.mxu0 0
    %126 = vmatprep.mubr.bf16.mxu0 0
    %127 = vmatmul.mubr.bf16.gmra.mrb[0].mxu0 %v83
    %v128 = vpop.f32.mrb[0].mxu0
    %v129 = vadd.f32 0.0, %v128
    %v130 = vpop.f32.mrb[0].mxu0
    %v131 = vpop.f32.mrb[0].mxu0
    %v132 = vadd.f32 0.0, %v131
    %v133 = vpop.f32.mrb[0].mxu0
    %134 = vmatprep.mubr.bf16.mxu0 0
    %135 = vmatmul.mubr.bf16.gmra.mrb[0].mxu0 %v86
    %v136 = vpop.f32.mrb[0].mxu0
    %v137 = vadd.f32 0.0, %v136
    %v138 = vpop.f32.mrb[0].mxu0
    %v139 = vpop.f32.mrb[0].mxu0
    %v140 = vadd.f32 0.0, %v139
    %v141 = vpop.f32.mrb[0].mxu0
    %142 = vmatprep.mubr.bf16.mxu0 0
    %143 = vmatmul.mubr.bf16.gmra.mrb[0].mxu0 %v89
    %v144 = vpop.f32.mrb[0].mxu0
    %v145 = vadd.f32 0.0, %v144
    %v146 = vpop.f32.mrb[0].mxu0
    %v147 = vpop.f32.mrb[0].mxu0
    %v148 = vadd.f32 0.0, %v147
    %v149 = vpop.f32.mrb[0].mxu0
    %150 = vmatprep.mubr.bf16.mxu0 0
    %151 = vmatmul.mubr.bf16.gmra.mrb[0].mxu0 %v92
    %v152 = vpop.f32.mrb[0].mxu0
    %v153 = vadd.f32 0.0, %v152
    %v154 = vpop.f32.mrb[0].mxu0
    %v155 = vpop.f32.mrb[0].mxu0
    %v156 = vadd.f32 0.0, %v155
    %v157 = vpop.f32.mrb[0].mxu0
    %158 = vdwg.mxu0
    %v159 = vpack.c.bf16 %v132, %v129
    %v160 = vpack.c.bf16 %v140, %v137
    %v161 = vpack.c.bf16 %v148, %v145
    %v162 = vpack.c.bf16 %v156, %v153
    %v163 = vld [vmem:[%s4] sm:$0x1]
    %v164 = vlaneseq
    %v165 = vshrl.u32 %v164, 7
    %v166 = vsub.s32 0, %v165
    %v167 = vrot.slane %v163, %v166
    %v176 = vunpack.c.l.b16 %v37
    %v177 = vunpack.c.l.b16 %v38
    %v178 = vunpack.c.l.b16 %v39
    %v179 = vunpack.c.l.b16 %v40
    %v180 = vunpack.c.l.b16 %v41
    %v181 = vunpack.c.l.b16 %v42
    %v182 = vunpack.c.l.b16 %v43
    %v183 = vunpack.c.l.b16 %v44
    %v184 = vpack.c.b16 %v177, %v176
    %v185 = vpack.c.b16 %v179, %v178
    %v186 = vpack.c.b16 %v181, %v180
    %v187 = vpack.c.b16 %v183, %v182
    %vm188 = vcmask 523264
    %v190 = vsel %vm188, %v184, 0
    %v193 = vsel %vm188, %v185, 0
    %v196 = vsel %vm188, %v186, 0
    %v199 = vsel %vm188, %v187, 0
    %201 = vmatprep.subr.bf16.mxu0 0
    %202 = vmatpush1.bf16.msra.mxu0 %v159
    %203 = vmatprep.subr.bf16.mxu0 0
    %204 = vmatpush1.bf16.msra.mxu0 %v160
    %205 = vmatprep.subr.bf16.mxu0 0
    %206 = vmatpush1.bf16.msra.mxu0 %v161
    %207 = vmatprep.subr.bf16.mxu0 0
    %208 = vmatpush1.bf16.msra.mxu0 %v162
    %209 = vmatprep.subr.bf16.mxu0 0
    %210 = vmatpush1.bf16.msra.mxu0 0
    %211 = vmatprep.subr.bf16.mxu0 0
    %212 = vmatpush1.bf16.msra.mxu0 0
    %213 = vmatprep.subr.bf16.mxu0 0
    %214 = vmatpush1.bf16.msra.mxu0 0
    %215 = vmatprep.subr.bf16.mxu0 0
    %216 = vmatpush1.bf16.msra.mxu0 0
    %217 = vmatprep.subr.bf16.mxu0 0
    %218 = vmatpush1.bf16.msra.mxu0 0
    %219 = vmatprep.subr.bf16.mxu0 0
    %220 = vmatpush1.bf16.msra.mxu0 0
    %221 = vmatprep.subr.bf16.mxu0 0
    %222 = vmatpush1.bf16.msra.mxu0 0
    %223 = vmatprep.subr.bf16.mxu0 0
    %224 = vmatpush1.bf16.msra.mxu0 0
    %225 = vmatprep.subr.bf16.mxu0 0
    %226 = vmatpush1.bf16.msra.mxu0 0
    %227 = vmatprep.subr.bf16.mxu0 0
    %228 = vmatpush1.bf16.msra.mxu0 0
    %229 = vmatprep.subr.bf16.mxu0 0
    %230 = vmatpush1.bf16.msra.mxu0 0
    %231 = vmatprep.subr.bf16.mxu0 0
    %232 = vmatpush1.bf16.msra.mxu0 0
    %233 = vmatprep.mubr.bf16.mxu0 0
    %234 = vmatmul.mubr.bf16.gmra.mrb[0].mxu0 %v190
    %v235 = vpop.f32.mrb[0].mxu0
    %v236 = vadd.f32 %v167, %v235
    %v237 = vpop.f32.mrb[0].mxu0
    %v238 = vpop.f32.mrb[0].mxu0
    %v239 = vadd.f32 %v167, %v238
    %v240 = vpop.f32.mrb[0].mxu0
    %241 = vmatprep.mubr.bf16.mxu0 0
    %242 = vmatmul.mubr.bf16.gmra.mrb[0].mxu0 %v193
    %v243 = vpop.f32.mrb[0].mxu0
    %v244 = vadd.f32 %v167, %v243
    %v245 = vpop.f32.mrb[0].mxu0
    %v246 = vpop.f32.mrb[0].mxu0
    %v247 = vadd.f32 %v167, %v246
    %v248 = vpop.f32.mrb[0].mxu0
    %249 = vmatprep.mubr.bf16.mxu0 0
    %250 = vmatmul.mubr.bf16.gmra.mrb[0].mxu0 %v196
    %v251 = vpop.f32.mrb[0].mxu0
    %v252 = vadd.f32 %v167, %v251
    %v253 = vpop.f32.mrb[0].mxu0
    %v254 = vpop.f32.mrb[0].mxu0
    %v255 = vadd.f32 %v167, %v254
    %v256 = vpop.f32.mrb[0].mxu0
    %257 = vmatprep.mubr.bf16.mxu0 0
    %258 = vmatmul.mubr.bf16.gmra.mrb[0].mxu0 %v199
    %v259 = vpop.f32.mrb[0].mxu0
    %v260 = vadd.f32 %v167, %v259
    %v261 = vpop.f32.mrb[0].mxu0
    %v262 = vpop.f32.mrb[0].mxu0
    %v263 = vadd.f32 %v167, %v262
    %v264 = vpop.f32.mrb[0].mxu0
    %265 = vdwg.mxu0
    %266 = vst [vmem:[%s5] sm:$0xff] %v236
    %267 = vst [vmem:[%s5 + $0x8] sm:$0xff] %v239
    %268 = vst [vmem:[%s5 + $0x10] sm:$0xff] %v244
    %269 = vst [vmem:[%s5 + $0x18] sm:$0xff] %v247
    %270 = vst [vmem:[%s5 + $0x20] sm:$0xff] %v252
    %271 = vst [vmem:[%s5 + $0x28] sm:$0xff] %v255
    %272 = vst [vmem:[%s5 + $0x30] sm:$0xff] %v260
    %273 = vst [vmem:[%s5 + $0x38] sm:$0xff] %v263
    %v274 = vmax.f32 %v236, 0.0
    %v275 = vmax.f32 %v239, 0.0
    %v276 = vmax.f32 %v244, 0.0
    %v277 = vmax.f32 %v247, 0.0
    %v278 = vmax.f32 %v252, 0.0
    %v279 = vmax.f32 %v255, 0.0
    %v280 = vmax.f32 %v260, 0.0
    %v281 = vmax.f32 %v263, 0.0
    %v282 = vpack.c.bf16 %v275, %v274
    %v283 = vpack.c.bf16 %v277, %v276
    %v284 = vpack.c.bf16 %v279, %v278
    %v285 = vpack.c.bf16 %v281, %v280
    %v286 = vld [vmem:[%s3] sm:$0xf]
    %v287 = vld [vmem:[%s3 + $0x4] sm:$0xf]
    %v288 = vld [vmem:[%s3 + $0x8] sm:$0xf]
    %v289 = vld [vmem:[%s3 + $0xc] sm:$0xf]
    %v290 = vld [vmem:[%s3 + $0x10] sm:$0xf]
    %v291 = vld [vmem:[%s3 + $0x14] sm:$0xf]
    %v292 = vld [vmem:[%s3 + $0x18] sm:$0xf]
    %v293 = vld [vmem:[%s3 + $0x1c] sm:$0xf]
    %v294 = vld [vmem:[%s3 + $0x20] sm:$0xf]
    %v295 = vld [vmem:[%s3 + $0x24] sm:$0xf]
    %v296 = vld [vmem:[%s3 + $0x28] sm:$0xf]
    %v297 = vld [vmem:[%s3 + $0x2c] sm:$0xf]
    %v298 = vld [vmem:[%s3 + $0x30] sm:$0xf]
    %v299 = vld [vmem:[%s3 + $0x34] sm:$0xf]
    %v300 = vld [vmem:[%s3 + $0x38] sm:$0xf]
    %v301 = vld [vmem:[%s3 + $0x3c] sm:$0xf]
    %v318 = vunpack.c.l.b16 %v286
    %v319 = vunpack.c.l.b16 %v287
    %v320 = vunpack.c.l.b16 %v288
    %v321 = vunpack.c.l.b16 %v289
    %v322 = vunpack.c.l.b16 %v290
    %v323 = vunpack.c.l.b16 %v291
    %v324 = vunpack.c.l.b16 %v292
    %v325 = vunpack.c.l.b16 %v293
    %v326 = vunpack.c.l.b16 %v294
    %v327 = vunpack.c.l.b16 %v295
    %v328 = vunpack.c.l.b16 %v296
    %v329 = vunpack.c.l.b16 %v297
    %v330 = vunpack.c.l.b16 %v298
    %v331 = vunpack.c.l.b16 %v299
    %v332 = vunpack.c.l.b16 %v300
    %v333 = vunpack.c.l.b16 %v301
    %v334 = vpack.c.b16 %v319, %v318
    %v335 = vpack.c.b16 %v321, %v320
    %v336 = vpack.c.b16 %v323, %v322
    %v337 = vpack.c.b16 %v325, %v324
    %v338 = vpack.c.b16 %v327, %v326
    %v339 = vpack.c.b16 %v329, %v328
    %v340 = vpack.c.b16 %v331, %v330
    %v341 = vpack.c.b16 %v333, %v332
    %350 = vmatprep.subr.bf16.mxu0 0
    %351 = vmatpush1.bf16.msra.mxu0 %v334
    %352 = vmatprep.subr.bf16.mxu0 0
    %353 = vmatpush1.bf16.msra.mxu0 %v335
    %354 = vmatprep.subr.bf16.mxu0 0
    %355 = vmatpush1.bf16.msra.mxu0 %v336
    %356 = vmatprep.subr.bf16.mxu0 0
    %357 = vmatpush1.bf16.msra.mxu0 %v337
    %358 = vmatprep.subr.bf16.mxu0 0
    %359 = vmatpush1.bf16.msra.mxu0 %v338
    %360 = vmatprep.subr.bf16.mxu0 0
    %361 = vmatpush1.bf16.msra.mxu0 %v339
    %362 = vmatprep.subr.bf16.mxu0 0
    %363 = vmatpush1.bf16.msra.mxu0 %v340
    %364 = vmatprep.subr.bf16.mxu0 0
    %365 = vmatpush1.bf16.msra.mxu0 %v341
    %366 = vmatprep.subr.bf16.mxu0 0
    %367 = vmatpush1.bf16.msra.mxu0 0
    %368 = vmatprep.subr.bf16.mxu0 0
    %369 = vmatpush1.bf16.msra.mxu0 0
    %370 = vmatprep.subr.bf16.mxu0 0
    %371 = vmatpush1.bf16.msra.mxu0 0
    %372 = vmatprep.subr.bf16.mxu0 0
    %373 = vmatpush1.bf16.msra.mxu0 0
    %374 = vmatprep.subr.bf16.mxu0 0
    %375 = vmatpush1.bf16.msra.mxu0 0
    %376 = vmatprep.subr.bf16.mxu0 0
    %377 = vmatpush1.bf16.msra.mxu0 0
    %378 = vmatprep.subr.bf16.mxu0 0
    %379 = vmatpush1.bf16.msra.mxu0 0
    %380 = vmatprep.subr.bf16.mxu0 0
    %381 = vmatpush1.bf16.msra.mxu0 0
    %382 = vmatprep.mubr.bf16.mxu0 0
    %383 = vmatmul.mubr.bf16.gmra.mrb[0].mxu0 %v282
    %v384 = vpop.f32.mrb[0].mxu0
    %v385 = vadd.f32 0.0, %v384
    %v386 = vpop.f32.mrb[0].mxu0
    %v387 = vpop.f32.mrb[0].mxu0
    %v388 = vadd.f32 0.0, %v387
    %v389 = vpop.f32.mrb[0].mxu0
    %390 = vmatprep.mubr.bf16.mxu0 0
    %391 = vmatmul.mubr.bf16.gmra.mrb[0].mxu0 %v283
    %v392 = vpop.f32.mrb[0].mxu0
    %v393 = vadd.f32 0.0, %v392
    %v394 = vpop.f32.mrb[0].mxu0
    %v395 = vpop.f32.mrb[0].mxu0
    %v396 = vadd.f32 0.0, %v395
    %v397 = vpop.f32.mrb[0].mxu0
    %398 = vmatprep.mubr.bf16.mxu0 0
    %399 = vmatmul.mubr.bf16.gmra.mrb[0].mxu0 %v284
    %v400 = vpop.f32.mrb[0].mxu0
    %v401 = vadd.f32 0.0, %v400
    %v402 = vpop.f32.mrb[0].mxu0
    %v403 = vpop.f32.mrb[0].mxu0
    %v404 = vadd.f32 0.0, %v403
    %v405 = vpop.f32.mrb[0].mxu0
    %406 = vmatprep.mubr.bf16.mxu0 0
    %407 = vmatmul.mubr.bf16.gmra.mrb[0].mxu0 %v285
    %v408 = vpop.f32.mrb[0].mxu0
    %v409 = vadd.f32 0.0, %v408
    %v410 = vpop.f32.mrb[0].mxu0
    %v411 = vpop.f32.mrb[0].mxu0
    %v412 = vadd.f32 0.0, %v411
    %v413 = vpop.f32.mrb[0].mxu0
    %414 = vdwg.mxu0
    %v415 = vpack.c.bf16 %v388, %v385
    %v416 = vpack.c.bf16 %v396, %v393
    %v417 = vpack.c.bf16 %v404, %v401
    %v418 = vpack.c.bf16 %v412, %v409
    %v419 = vld [vmem:[%s4 + $0x1] sm:$0x1]
    %v420 = vlaneseq
    %v421 = vshrl.u32 %v420, 7
    %v422 = vsub.s32 0, %v421
    %v423 = vrot.slane %v419, %v422
    %424 = vmatprep.subr.bf16.mxu0 0
    %425 = vmatpush1.bf16.msra.mxu0 %v415
    %426 = vmatprep.subr.bf16.mxu0 0
    %427 = vmatpush1.bf16.msra.mxu0 %v416
    %428 = vmatprep.subr.bf16.mxu0 0
    %429 = vmatpush1.bf16.msra.mxu0 %v417
    %430 = vmatprep.subr.bf16.mxu0 0
    %431 = vmatpush1.bf16.msra.mxu0 %v418
    %432 = vmatprep.subr.bf16.mxu0 0
    %433 = vmatpush1.bf16.msra.mxu0 0
    %434 = vmatprep.subr.bf16.mxu0 0
    %435 = vmatpush1.bf16.msra.mxu0 0
    %436 = vmatprep.subr.bf16.mxu0 0
    %437 = vmatpush1.bf16.msra.mxu0 0
    %438 = vmatprep.subr.bf16.mxu0 0
    %439 = vmatpush1.bf16.msra.mxu0 0
    %440 = vmatprep.subr.bf16.mxu0 0
    %441 = vmatpush1.bf16.msra.mxu0 0
    %442 = vmatprep.subr.bf16.mxu0 0
    %443 = vmatpush1.bf16.msra.mxu0 0
    %444 = vmatprep.subr.bf16.mxu0 0
    %445 = vmatpush1.bf16.msra.mxu0 0
    %446 = vmatprep.subr.bf16.mxu0 0
    %447 = vmatpush1.bf16.msra.mxu0 0
    %448 = vmatprep.subr.bf16.mxu0 0
    %449 = vmatpush1.bf16.msra.mxu0 0
    %450 = vmatprep.subr.bf16.mxu0 0
    %451 = vmatpush1.bf16.msra.mxu0 0
    %452 = vmatprep.subr.bf16.mxu0 0
    %453 = vmatpush1.bf16.msra.mxu0 0
    %454 = vmatprep.subr.bf16.mxu0 0
    %455 = vmatpush1.bf16.msra.mxu0 0
    %456 = vmatprep.mubr.bf16.mxu0 0
    %457 = vmatmul.mubr.bf16.gmra.mrb[0].mxu0 %v190
    %v458 = vpop.f32.mrb[0].mxu0
    %v459 = vadd.f32 %v423, %v458
    %v460 = vpop.f32.mrb[0].mxu0
    %v461 = vpop.f32.mrb[0].mxu0
    %v462 = vadd.f32 %v423, %v461
    %v463 = vpop.f32.mrb[0].mxu0
    %464 = vmatprep.mubr.bf16.mxu0 0
    %465 = vmatmul.mubr.bf16.gmra.mrb[0].mxu0 %v193
    %v466 = vpop.f32.mrb[0].mxu0
    %v467 = vadd.f32 %v423, %v466
    %v468 = vpop.f32.mrb[0].mxu0
    %v469 = vpop.f32.mrb[0].mxu0
    %v470 = vadd.f32 %v423, %v469
    %v471 = vpop.f32.mrb[0].mxu0
    %472 = vmatprep.mubr.bf16.mxu0 0
    %473 = vmatmul.mubr.bf16.gmra.mrb[0].mxu0 %v196
    %v474 = vpop.f32.mrb[0].mxu0
    %v475 = vadd.f32 %v423, %v474
    %v476 = vpop.f32.mrb[0].mxu0
    %v477 = vpop.f32.mrb[0].mxu0
    %v478 = vadd.f32 %v423, %v477
    %v479 = vpop.f32.mrb[0].mxu0
    %480 = vmatprep.mubr.bf16.mxu0 0
    %481 = vmatmul.mubr.bf16.gmra.mrb[0].mxu0 %v199
    %v482 = vpop.f32.mrb[0].mxu0
    %v483 = vadd.f32 %v423, %v482
    %v484 = vpop.f32.mrb[0].mxu0
    %v485 = vpop.f32.mrb[0].mxu0
    %v486 = vadd.f32 %v423, %v485
    %v487 = vpop.f32.mrb[0].mxu0
    %488 = vdwg.mxu0
    %489 = vmax.xlane.f32.xlu0 %v459
    %v490 = vpop.xlane.xlu0 %489
    %491 = vmax.xlane.f32.xlu0 %v462
    %v492 = vpop.xlane.xlu0 %491
    %493 = vmax.xlane.f32.xlu0 %v467
    %v494 = vpop.xlane.xlu0 %493
    %495 = vmax.xlane.f32.xlu0 %v470
    %v496 = vpop.xlane.xlu0 %495
    %497 = vmax.xlane.f32.xlu0 %v475
    %v498 = vpop.xlane.xlu0 %497
    %499 = vmax.xlane.f32.xlu0 %v478
    %v500 = vpop.xlane.xlu0 %499
    %501 = vmax.xlane.f32.xlu0 %v483
    %v502 = vpop.xlane.xlu0 %501
    %503 = vmax.xlane.f32.xlu0 %v486
    %v504 = vpop.xlane.xlu0 %503
    %v505 = vsub.f32 %v459, %v490
    %v506 = vsub.f32 %v462, %v492
    %v507 = vsub.f32 %v467, %v494
    %v508 = vsub.f32 %v470, %v496
    %v509 = vsub.f32 %v475, %v498
    %v510 = vsub.f32 %v478, %v500
    %v511 = vsub.f32 %v483, %v502
    %v512 = vsub.f32 %v486, %v504
    %v513 = vmul.f32 %v505, 1.442695
    %v514 = vpow.pop %v513
    %v515 = vmul.f32 %v506, 1.442695
    %v516 = vpow.pop %v515
    %v517 = vmul.f32 %v507, 1.442695
    %v518 = vpow.pop %v517
    %v519 = vmul.f32 %v508, 1.442695
    %v520 = vpow.pop %v519
    %v521 = vmul.f32 %v509, 1.442695
    %v522 = vpow.pop %v521
    %v523 = vmul.f32 %v510, 1.442695
    %v524 = vpow.pop %v523
    %v525 = vmul.f32 %v511, 1.442695
    %v526 = vpow.pop %v525
    %v527 = vmul.f32 %v512, 1.442695
    %v528 = vpow.pop %v527
    %529 = vadd.xlane.f32.xlu0 %v514
    %v530 = vpop.xlane.xlu0 %529
    %531 = vadd.xlane.f32.xlu0 %v516
    %v532 = vpop.xlane.xlu0 %531
    %533 = vadd.xlane.f32.xlu0 %v518
    %v534 = vpop.xlane.xlu0 %533
    %535 = vadd.xlane.f32.xlu0 %v520
    %v536 = vpop.xlane.xlu0 %535
    %537 = vadd.xlane.f32.xlu0 %v522
    %v538 = vpop.xlane.xlu0 %537
    %539 = vadd.xlane.f32.xlu0 %v524
    %v540 = vpop.xlane.xlu0 %539
    %541 = vadd.xlane.f32.xlu0 %v526
    %v542 = vpop.xlane.xlu0 %541
    %543 = vadd.xlane.f32.xlu0 %v528
    %v544 = vpop.xlane.xlu0 %543
    %v545 = vlog2.pop %v530
    %v546 = vmul.f32 %v545, 0.6931472
    %v547 = vlog2.pop %v532
    %v548 = vmul.f32 %v547, 0.6931472
    %v549 = vlog2.pop %v534
    %v550 = vmul.f32 %v549, 0.6931472
    %v551 = vlog2.pop %v536
    %v552 = vmul.f32 %v551, 0.6931472
    %v553 = vlog2.pop %v538
    %v554 = vmul.f32 %v553, 0.6931472
    %v555 = vlog2.pop %v540
    %v556 = vmul.f32 %v555, 0.6931472
    %v557 = vlog2.pop %v542
    %v558 = vmul.f32 %v557, 0.6931472
    %v559 = vlog2.pop %v544
    %v560 = vmul.f32 %v559, 0.6931472
    %v561 = vadd.f32 %v490, %v546
    %v562 = vadd.f32 %v492, %v548
    %v563 = vadd.f32 %v494, %v550
    %v564 = vadd.f32 %v496, %v552
    %v565 = vadd.f32 %v498, %v554
    %v566 = vadd.f32 %v500, %v556
    %v567 = vadd.f32 %v502, %v558
    %v568 = vadd.f32 %v504, %v560
    %v569 = vsub.f32 %v459, %v561
    %v570 = vsub.f32 %v462, %v562
    %v571 = vsub.f32 %v467, %v563
    %v572 = vsub.f32 %v470, %v564
    %v573 = vsub.f32 %v475, %v565
    %v574 = vsub.f32 %v478, %v566
    %v575 = vsub.f32 %v483, %v567
    %v576 = vsub.f32 %v486, %v568
    %577 = vst [vmem:[%s6] sm:$0xff] %v569
    %578 = vst [vmem:[%s6 + $0x8] sm:$0xff] %v570
    %579 = vst [vmem:[%s6 + $0x10] sm:$0xff] %v571
    %580 = vst [vmem:[%s6 + $0x18] sm:$0xff] %v572
    %581 = vst [vmem:[%s6 + $0x20] sm:$0xff] %v573
    %582 = vst [vmem:[%s6 + $0x28] sm:$0xff] %v574
    %583 = vst [vmem:[%s6 + $0x30] sm:$0xff] %v575
    %584 = vst [vmem:[%s6 + $0x38] sm:$0xff] %v576
    // Predicated region
    $region26: #{gcn_forward.1} parent=1 // pred_check
      _
    $region27: #{gcn_forward.1} parent=1 // pred_check_branch
      %586 = sbr.rel (0) target = $region29
    $region28: #{gcn_forward.1} parent=1 // pred_region
      _
    $region29: #{gcn_forward.1} parent=1 // pred_fallthru
      _
    // Predicated region
    $region30: #{gcn_forward.1} parent=1 // pred_check
      _
    $region31: #{gcn_forward.1} parent=1 // pred_check_branch
      %588 = sbr.rel (0) target = $region33
    $region32: #{gcn_forward.1} parent=1 // pred_region
      _
    $region33: #{gcn_forward.1} parent=1 // pred_fallthru
      _
    // Predicated region
    $region34: #{gcn_forward.1} parent=1 // pred_check
      _
    $region35: #{gcn_forward.1} parent=1 // pred_check_branch
      %590 = sbr.rel (0) target = $region37
    $region36: #{gcn_forward.1} parent=1 // pred_region
      _
    $region37: #{gcn_forward.1} parent=1 // pred_fallthru
      _
    // Predicated region
    $region38: #{gcn_forward.1} parent=1 // pred_check
      _
    $region39: #{gcn_forward.1} parent=1 // pred_check_branch
      %592 = sbr.rel (0) target = $region41
    $region40: #{gcn_forward.1} parent=1 // pred_region
      _
    $region41: #{gcn_forward.1} parent=1 // pred_fallthru
      _
    %593 = vsyncpa [#allocation3], 1

</llo_original>
